<compile_context>
chip_gen: v6e
topology: v6e:2x2x1
jax: 0.10.0
libtpu: 0.0.40
codegen_flags: <defaults>
</compile_context>

<pallas_src>
import functools

import jax
import jax.numpy as jnp
from jax.experimental import pallas as pl
from jax.experimental.pallas import tpu as pltpu


# -------------------- fused SAGEConv layer kernel ---------------------------

def _sage_layer_kernel(a_ref, xall_ref, xrow_ref, wl_ref, wr_ref, b_ref,
                       out_ref, *, apply_relu, apply_log_softmax):
    a = a_ref[...]            # (tile_n, N)     row-normalized adjacency rows
    x_all = xall_ref[...]     # (N, F_in)       all source-node features
    x_i = xrow_ref[...]       # (tile_n, F_in)  this tile's own (root) features

    # mean aggregation over in-neighbours: single MXU matmul
    agg = jnp.dot(a, x_all, preferred_element_type=jnp.float32)

    # W_l * mean(neigh) + W_r * x_i + b   (MXU matmuls, f32 accumulate)
    out = (jnp.dot(agg, wl_ref[...], preferred_element_type=jnp.float32)
           + jnp.dot(x_i, wr_ref[...], preferred_element_type=jnp.float32)
           + b_ref[...])

    if apply_relu:
        out = jnp.maximum(out, 0.0)
    if apply_log_softmax:
        m = jnp.max(out, axis=-1, keepdims=True)
        lse = jnp.log(jnp.sum(jnp.exp(out - m), axis=-1, keepdims=True)) + m
        out = out - lse
    out_ref[...] = out.astype(out_ref.dtype)


def sage_conv(x, adj_norm, w_l, w_r, b, *, apply_relu=False,
              apply_log_softmax=False, tile_n=128):
    """One dense SAGEConv layer as a single fused Pallas kernel."""
    n, f_in = x.shape
    f_out = w_l.shape[1]
    tile_n = min(tile_n, n)

    kernel = functools.partial(_sage_layer_kernel, apply_relu=apply_relu,
                               apply_log_softmax=apply_log_softmax)
    return pl.pallas_call(
        kernel,
        out_shape=jax.ShapeDtypeStruct((n, f_out), jnp.float32),
        grid=(pl.cdiv(n, tile_n),),
        in_specs=[
            pl.BlockSpec((tile_n, n), lambda i: (i, 0)),      # adjacency rows
            pl.BlockSpec((n, f_in), lambda i: (0, 0)),        # full x (resident)
            pl.BlockSpec((tile_n, f_in), lambda i: (i, 0)),   # root-term rows
            pl.BlockSpec((f_in, f_out), lambda i: (0, 0)),    # W_l
            pl.BlockSpec((f_in, f_out), lambda i: (0, 0)),    # W_r
            pl.BlockSpec((1, f_out), lambda i: (0, 0)),       # bias
        ],
        out_specs=pl.BlockSpec((tile_n, f_out), lambda i: (i, 0)),
        compiler_params=pltpu.CompilerParams(
            dimension_semantics=("parallel",),       # rows split across TCs
            vmem_limit_bytes=64 << 20),
    )(adj_norm, x, x, w_l, w_r, b)


# -------------------- parameter init (deterministic, in-script) -------------

def _glorot(key, shape):
    fan_in, fan_out = shape[-2], shape[-1]
    lim = jnp.sqrt(6.0 / (fan_in + fan_out))
    return jax.random.uniform(key, shape, jnp.float32, -lim, lim)


def init_graphsage(key, feature, hidden, classes):
    ks = jax.random.split(key, 6)
    # lane-pad the class dim to a multiple of 128; pad bias with -1e30 so the
    # padded logits vanish under log_softmax and can simply be sliced off.
    classes_p = ((classes + 127) // 128) * 128
    pad = classes_p - classes
    w2l = jnp.pad(_glorot(ks[2], (hidden, classes)), ((0, 0), (0, pad)))
    w2r = jnp.pad(_glorot(ks[3], (hidden, classes)), ((0, 0), (0, pad)))
    b1 = 0.1 * jax.random.normal(ks[4], (1, hidden), jnp.float32)
    b2_real = 0.1 * jax.random.normal(ks[5], (1, classes), jnp.float32)
    b2 = jnp.concatenate(
        [b2_real, jnp.full((1, pad), -1e30, jnp.float32)], axis=-1)
    return {
        "sage1": {"w_l": _glorot(ks[0], (feature, hidden)),
                  "w_r": _glorot(ks[1], (feature, hidden)),
                  "b": b1},
        "sage2": {"w_l": w2l, "w_r": w2r, "b": b2},
    }


def graphsage_forward(params, x, adj_norm, classes, *, tile_n=128):
    # sage1 -> relu (fused into kernel epilogue)
    h = sage_conv(x, adj_norm, **params["sage1"], apply_relu=True,
                  tile_n=tile_n)
    # TODO(synk): F.dropout(x, training=self.training) — eval-mode identity
    # here (stochastic p=0.5 mask omitted).
    # sage2 -> log_softmax over (padded) classes, fused into kernel epilogue
    out = sage_conv(h, adj_norm, **params["sage2"], apply_log_softmax=True,
                    tile_n=tile_n)
    return out[:, :classes]


# -------------------- pure-JAX reference (sanity check) ---------------------

def _ref_forward(params, x, adj_norm, classes):
    p1, p2 = params["sage1"], params["sage2"]
    h = jax.nn.relu((adj_norm @ x) @ p1["w_l"] + x @ p1["w_r"] + p1["b"])
    logits = ((adj_norm @ h) @ p2["w_l"][:, :classes]
              + h @ p2["w_r"][:, :classes] + p2["b"][:, :classes])
    return jax.nn.log_softmax(logits, axis=-1)


# -------------------- glue ---------------------------------------------------

def edge_index_to_norm_adj(edge_index, n):
    """Dense row-normalized adjacency: A[i, j] = 1/deg(i) iff edge j -> i."""
    src, dst = edge_index[0], edge_index[1]
    adj = jnp.zeros((n, n), jnp.float32).at[dst, src].add(1.0)
    deg = jnp.sum(adj, axis=1, keepdims=True)
    return adj / jnp.maximum(deg, 1.0)   # isolated nodes aggregate to 0


if __name__ == "__main__":
    N, FEAT, HIDDEN, CLASSES = 64, 16, 128, 8
    key = jax.random.PRNGKey(0)
    kx, kp = jax.random.split(key)

    # node features
    x = jax.random.normal(kx, (N, FEAT), jnp.float32)

    # deterministic bidirectional ring graph as edge_index [2, E]
    idx = jnp.arange(N)
    src = jnp.concatenate([idx, (idx + 1) % N])
    dst = jnp.concatenate([(idx + 1) % N, idx])
    edge_index = jnp.stack([src, dst]).astype(jnp.int32)
    adj_norm = edge_index_to_norm_adj(edge_index, N)

    params = init_graphsage(kp, FEAT, HIDDEN, CLASSES)

    # tile_n=32 exercises the (parallel) destination-row grid at this size
    out = jax.block_until_ready(
        graphsage_forward(params, x, adj_norm, CLASSES, tile_n=32))
    assert out.shape == (N, CLASSES), out.shape

    ref = _ref_forward(params, x, adj_norm, CLASSES)
    assert jnp.allclose(out, ref, atol=1e-4, rtol=1e-4), float(
        jnp.max(jnp.abs(out - ref)))

    print("KERNEL_OK")
</pallas_src>

<mosaic_0001>
module attributes {stable_mosaic.version = 11 : i64} {
  func.func @_sage_layer_kernel(%arg0: i32, %arg1: memref<32x64xf32, #tpu.memory_space<vmem>>, %arg2: memref<64x16xf32, #tpu.memory_space<vmem>>, %arg3: memref<32x16xf32, #tpu.memory_space<vmem>>, %arg4: memref<16x128xf32, #tpu.memory_space<vmem>>, %arg5: memref<16x128xf32, #tpu.memory_space<vmem>>, %arg6: memref<1x128xf32, #tpu.memory_space<vmem>>, %arg7: memref<32x128xf32, #tpu.memory_space<vmem>>) attributes {dimension_semantics = [#tpu.dimension_semantics<parallel>], iteration_bounds = array<i64: 2>, scalar_prefetch = 0 : i64, scratch_operands = 0 : i64, tpu.core_type = #tpu.core_type<tc>, window_params = [{transform_indices = @transform_0, window_bounds = array<i64: 32, 64>}, {pipeline_mode = #tpu.pipeline_mode<synchronous>, transform_indices = @transform_1, window_bounds = array<i64: 64, 16>}, {transform_indices = @transform_2, window_bounds = array<i64: 32, 16>}, {pipeline_mode = #tpu.pipeline_mode<synchronous>, transform_indices = @transform_3, window_bounds = array<i64: 16, 128>}, {pipeline_mode = #tpu.pipeline_mode<synchronous>, transform_indices = @transform_4, window_bounds = array<i64: 16, 128>}, {pipeline_mode = #tpu.pipeline_mode<synchronous>, transform_indices = @transform_5, window_bounds = array<i64: 1, 128>}, {transform_indices = @transform_6, window_bounds = array<i64: 32, 128>}]} {
    %c0 = arith.constant 0 : index
    %c0_0 = arith.constant 0 : index
    %0 = vector.load %arg1[%c0, %c0_0] : memref<32x64xf32, #tpu.memory_space<vmem>>, vector<32x64xf32>
    %c0_1 = arith.constant 0 : index
    %c0_2 = arith.constant 0 : index
    %1 = vector.load %arg2[%c0_1, %c0_2] : memref<64x16xf32, #tpu.memory_space<vmem>>, vector<64x16xf32>
    %c0_3 = arith.constant 0 : index
    %c0_4 = arith.constant 0 : index
    %2 = vector.load %arg3[%c0_3, %c0_4] : memref<32x16xf32, #tpu.memory_space<vmem>>, vector<32x16xf32>
    %cst = arith.constant dense<0.000000e+00> : vector<32x16xf32>
    %3 = tpu.matmul %0, %1, %cst {dimension_numbers = #tpu.dot_dimension_numbers<[1], [0], [0], [1], [0, 0, 1, 1], [], []>} : vector<32x64xf32>, vector<64x16xf32>, vector<32x16xf32> -> vector<32x16xf32>
    %c0_5 = arith.constant 0 : index
    %c0_6 = arith.constant 0 : index
    %4 = vector.load %arg4[%c0_5, %c0_6] : memref<16x128xf32, #tpu.memory_space<vmem>>, vector<16x128xf32>
    %cst_7 = arith.constant dense<0.000000e+00> : vector<32x128xf32>
    %5 = tpu.matmul %3, %4, %cst_7 {dimension_numbers = #tpu.dot_dimension_numbers<[1], [0], [0], [1], [0, 0, 1, 1], [], []>} : vector<32x16xf32>, vector<16x128xf32>, vector<32x128xf32> -> vector<32x128xf32>
    %c0_8 = arith.constant 0 : index
    %c0_9 = arith.constant 0 : index
    %6 = vector.load %arg5[%c0_8, %c0_9] : memref<16x128xf32, #tpu.memory_space<vmem>>, vector<16x128xf32>
    %cst_10 = arith.constant dense<0.000000e+00> : vector<32x128xf32>
    %7 = tpu.matmul %2, %6, %cst_10 {dimension_numbers = #tpu.dot_dimension_numbers<[1], [0], [0], [1], [0, 0, 1, 1], [], []>} : vector<32x16xf32>, vector<16x128xf32>, vector<32x128xf32> -> vector<32x128xf32>
    %8 = arith.addf %5, %7 : vector<32x128xf32>
    %c0_11 = arith.constant 0 : index
    %c0_12 = arith.constant 0 : index
    %9 = vector.load %arg6[%c0_11, %c0_12] : memref<1x128xf32, #tpu.memory_space<vmem>>, vector<1x128xf32>
    %10 = vector.broadcast %9 : vector<1x128xf32> to vector<32x128xf32>
    %11 = arith.addf %8, %10 : vector<32x128xf32>
    %cst_13 = arith.constant 0.000000e+00 : f32
    %12 = vector.broadcast %cst_13 : f32 to vector<32x128xf32>
    %13 = arith.maximumf %11, %12 : vector<32x128xf32>
    %c0_14 = arith.constant 0 : index
    %c0_15 = arith.constant 0 : index
    %14 = vector.load %arg7[%c0_14, %c0_15] : memref<32x128xf32, #tpu.memory_space<vmem>>, vector<32x128xf32>
    tpu.vector_store %arg7[%c0_14, %c0_15], %13 {strides = array<i32>} : memref<32x128xf32, #tpu.memory_space<vmem>>, vector<32x128xf32>,
    return
  }
  func.func @transform_0(%arg0: i32) -> (i32, i32) {
    %c0_i32 = arith.constant 0 : i32
    %c0_i32_0 = arith.constant 0 : i32
    return %arg0, %c0_i32 : i32, i32
  }
  func.func @transform_1(%arg0: i32) -> (i32, i32) {
    %c0_i32 = arith.constant 0 : i32
    %c0_i32_0 = arith.constant 0 : i32
    %c0_i32_1 = arith.constant 0 : i32
    return %c0_i32, %c0_i32_0 : i32, i32
  }
  func.func @transform_2(%arg0: i32) -> (i32, i32) {
    %c0_i32 = arith.constant 0 : i32
    %c0_i32_0 = arith.constant 0 : i32
    return %arg0, %c0_i32 : i32, i32
  }
  func.func @transform_3(%arg0: i32) -> (i32, i32) {
    %c0_i32 = arith.constant 0 : i32
    %c0_i32_0 = arith.constant 0 : i32
    %c0_i32_1 = arith.constant 0 : i32
    return %c0_i32, %c0_i32_0 : i32, i32
  }
  func.func @transform_4(%arg0: i32) -> (i32, i32) {
    %c0_i32 = arith.constant 0 : i32
    %c0_i32_0 = arith.constant 0 : i32
    %c0_i32_1 = arith.constant 0 : i32
    return %c0_i32, %c0_i32_0 : i32, i32
  }
  func.func @transform_5(%arg0: i32) -> (i32, i32) {
    %c0_i32 = arith.constant 0 : i32
    %c0_i32_0 = arith.constant 0 : i32
    %c0_i32_1 = arith.constant 0 : i32
    return %c0_i32, %c0_i32_0 : i32, i32
  }
  func.func @transform_6(%arg0: i32) -> (i32, i32) {
    %c0_i32 = arith.constant 0 : i32
    %c0_i32_0 = arith.constant 0 : i32
    return %arg0, %c0_i32 : i32, i32
  }
}

</mosaic_0001>

<llo_original>
// kernel: tpu_custom_call.1
$region0: #{tpu_custom_call.1}
  #allocation0 [shape = 'u32[]', space=smem, size = 0x4, offset = 0x4, fixed_abs, tag = 'smem constant byte address 0x4 - core index']
  #allocation1 [shape = 'u32[144,128]{1,0:T(1,128)}', space=vmem, size = 0x12000, scoped, tag = 'internal scratch']
  %s0 = inlined_call_operand.vmem [shape: f32[64,64], index: 0, kind: input, shape index: {}]
  %s1 = inlined_call_operand.vmem [shape: f32[64,16], index: 1, kind: input, shape index: {}]
  %s2 = inlined_call_operand.vmem [shape: f32[64,16], index: 2, kind: input, shape index: {}]
  %s3 = inlined_call_operand.vmem [shape: f32[16,128], index: 3, kind: input, shape index: {}]
  %s4 = inlined_call_operand.vmem [shape: f32[16,128], index: 4, kind: input, shape index: {}]
  %s5 = inlined_call_operand.vmem [shape: f32[1,128], index: 5, kind: input, shape index: {}]
  %s6 = inlined_call_operand.hbm [shape: f32[64,128], index: 6, kind: output, shape index: {}]
  %s7 = sld [smem:[#allocation0]]
  $region57: #{tpu_custom_call.1} parent=0
    _
  %s9 = ssub.s32 1, %s7
  %s10 = scalar_select 0, %s9, %s7
  $region1: #{tpu_custom_call.1} parent=0
    #allocation2 [shape = 'u8[32768]{0}', space=vmem, size = 0x8000, scoped, tag = 'output window, operand 0']
    #allocation3 [shape = 's32[2]{0}', space=sflag, size = 0x8, scoped, tag = 'scoped memory for tpu_custom_call.1']
    %11 = vsyncpa [#allocation3], 0
    %s12 = scalar_lea.sflag [#allocation3], 1
    %13 = vsyncpa %s12, 0
    loop: start=0, step=1, limit=4
    $region2: #{tpu_custom_call.1} parent=1 // loop_pre_header
      _
    $region3: #{tpu_custom_call.1} parent=1 // loop_header
      %s15 = sphi 0, %s19
      %p16 = scmp.ge.s32.totalorder %s15, 4
      %s25 = sphi 0, %s27
      %s28 = sphi 0, %s25
      %s29 = sphi 0, %s28
      %s45 = sphi 0, %s29
      %s49 = sphi 0, %s49
      %s51 = sphi 0, %s49
      %s52 = sphi 0, %s51
      %s66 = sphi 0, %s52
      %s72 = sphi 0, %s74
      %s75 = sphi 0, %s72
      %s76 = sphi 0, %s75
      %s92 = sphi 0, %s76
      %s96 = sphi 0, %s96
      %s98 = sphi 0, %s96
      %s99 = sphi 0, %s98
      %s113 = sphi 0, %s99
      %s117 = sphi 0, %s117
      %s119 = sphi 0, %s117
      %s120 = sphi 0, %s119
      %s134 = sphi 0, %s120
      %s138 = sphi 0, %s138
      %s140 = sphi 0, %s138
      %s141 = sphi 0, %s140
      %s155 = sphi 0, %s141
      %s161 = sphi 0, %s163
      %s164 = sphi 0, %s161
      %s165 = sphi 0, %s164
      %s181 = sphi 0, %s165
    $region4: #{tpu_custom_call.1} parent=1 // loop_header_branch
      %18 = sbr.rel (%p16) target = $region8
    $region5: #{tpu_custom_call.1} parent=1 // loop_body
      %s20 = ssub.s32 %s15, 1
      %s21 = ssub.s32 %s15, 2
      %s22 = sadd.s32 %s15, 1
      %s23 = ssub.s32 %s15, %s22
      %p24 = scmp.eq.s32.totalorder %s23, 0
      %s26 = sadd.s32 %s25, 1
      %s27 = scalar_select %p24, %s25, %s26
      %p30 = pneg %p24
      %p31 = scmp.eq.s32.totalorder %s15, 1
      %p32 = por %p30, %p31
      %p33 = scmp.ne.s32.totalorder %s25, %s28
      %p34 = scmp.eq.s32.totalorder %s15, 0
      %p35 = por %p33, %p34
      %p36 = scmp.ne.s32.totalorder %s25, %s28
      %p37 = scmp.eq.s32.totalorder %s20, 1
      %p38 = por %p36, %p37
      %p39 = scmp.ne.s32.totalorder %s28, %s29
      %p40 = scmp.eq.s32.totalorder %s20, 0
      %p41 = por %p39, %p40
      %p42 = scmp.ne.s32.totalorder %s28, %s29
      %p43 = scmp.eq.s32.totalorder %s21, 1
      %p44 = por %p42, %p43
      %p46 = scmp.ne.s32.totalorder %s29, %s45
      %p47 = scmp.eq.s32.totalorder %s21, 0
      %p48 = por %p46, %p47
      %s50 = sadd.s32 %s49, 1
      %p53 = scmp.eq.s32.totalorder %s15, 1
      %p54 = scmp.ne.s32.totalorder %s49, %s51
      %p55 = scmp.eq.s32.totalorder %s15, 0
      %p56 = por %p54, %p55
      %p57 = scmp.ne.s32.totalorder %s49, %s51
      %p58 = scmp.eq.s32.totalorder %s20, 1
      %p59 = por %p57, %p58
      %p60 = scmp.ne.s32.totalorder %s51, %s52
      %p61 = scmp.eq.s32.totalorder %s20, 0
      %p62 = por %p60, %p61
      %p63 = scmp.ne.s32.totalorder %s51, %s52
      %p64 = scmp.eq.s32.totalorder %s21, 1
      %p65 = por %p63, %p64
      %p67 = scmp.ne.s32.totalorder %s52, %s66
      %p68 = scmp.eq.s32.totalorder %s21, 0
      %p69 = por %p67, %p68
      %s70 = ssub.s32 %s15, %s22
      %p71 = scmp.eq.s32.totalorder %s70, 0
      %s73 = sadd.s32 %s72, 1
      %s74 = scalar_select %p71, %s72, %s73
      %p77 = pneg %p71
      %p78 = scmp.eq.s32.totalorder %s15, 1
      %p79 = por %p77, %p78
      %p80 = scmp.ne.s32.totalorder %s72, %s75
      %p81 = scmp.eq.s32.totalorder %s15, 0
      %p82 = por %p80, %p81
      %p83 = scmp.ne.s32.totalorder %s72, %s75
      %p84 = scmp.eq.s32.totalorder %s20, 1
      %p85 = por %p83, %p84
      %p86 = scmp.ne.s32.totalorder %s75, %s76
      %p87 = scmp.eq.s32.totalorder %s20, 0
      %p88 = por %p86, %p87
      %p89 = scmp.ne.s32.totalorder %s75, %s76
      %p90 = scmp.eq.s32.totalorder %s21, 1
      %p91 = por %p89, %p90
      %p93 = scmp.ne.s32.totalorder %s76, %s92
      %p94 = scmp.eq.s32.totalorder %s21, 0
      %p95 = por %p93, %p94
      %s97 = sadd.s32 %s96, 1
      %p100 = scmp.eq.s32.totalorder %s15, 1
      %p101 = scmp.ne.s32.totalorder %s96, %s98
      %p102 = scmp.eq.s32.totalorder %s15, 0
      %p103 = por %p101, %p102
      %p104 = scmp.ne.s32.totalorder %s96, %s98
      %p105 = scmp.eq.s32.totalorder %s20, 1
      %p106 = por %p104, %p105
      %p107 = scmp.ne.s32.totalorder %s98, %s99
      %p108 = scmp.eq.s32.totalorder %s20, 0
      %p109 = por %p107, %p108
      %p110 = scmp.ne.s32.totalorder %s98, %s99
      %p111 = scmp.eq.s32.totalorder %s21, 1
      %p112 = por %p110, %p111
      %p114 = scmp.ne.s32.totalorder %s99, %s113
      %p115 = scmp.eq.s32.totalorder %s21, 0
      %p116 = por %p114, %p115
      %s118 = sadd.s32 %s117, 1
      %p121 = scmp.eq.s32.totalorder %s15, 1
      %p122 = scmp.ne.s32.totalorder %s117, %s119
      %p123 = scmp.eq.s32.totalorder %s15, 0
      %p124 = por %p122, %p123
      %p125 = scmp.ne.s32.totalorder %s117, %s119
      %p126 = scmp.eq.s32.totalorder %s20, 1
      %p127 = por %p125, %p126
      %p128 = scmp.ne.s32.totalorder %s119, %s120
      %p129 = scmp.eq.s32.totalorder %s20, 0
      %p130 = por %p128, %p129
      %p131 = scmp.ne.s32.totalorder %s119, %s120
      %p132 = scmp.eq.s32.totalorder %s21, 1
      %p133 = por %p131, %p132
      %p135 = scmp.ne.s32.totalorder %s120, %s134
      %p136 = scmp.eq.s32.totalorder %s21, 0
      %p137 = por %p135, %p136
      %s139 = sadd.s32 %s138, 1
      %p142 = scmp.eq.s32.totalorder %s15, 1
      %p143 = scmp.ne.s32.totalorder %s138, %s140
      %p144 = scmp.eq.s32.totalorder %s15, 0
      %p145 = por %p143, %p144
      %p146 = scmp.ne.s32.totalorder %s138, %s140
      %p147 = scmp.eq.s32.totalorder %s20, 1
      %p148 = por %p146, %p147
      %p149 = scmp.ne.s32.totalorder %s140, %s141
      %p150 = scmp.eq.s32.totalorder %s20, 0
      %p151 = por %p149, %p150
      %p152 = scmp.ne.s32.totalorder %s140, %s141
      %p153 = scmp.eq.s32.totalorder %s21, 1
      %p154 = por %p152, %p153
      %p156 = scmp.ne.s32.totalorder %s141, %s155
      %p157 = scmp.eq.s32.totalorder %s21, 0
      %p158 = por %p156, %p157
      %s159 = ssub.s32 %s15, %s22
      %p160 = scmp.eq.s32.totalorder %s159, 0
      %s162 = sadd.s32 %s161, 1
      %s163 = scalar_select %p160, %s161, %s162
      %p166 = pneg %p160
      %p167 = scmp.eq.s32.totalorder %s15, 1
      %p168 = por %p166, %p167
      %p169 = scmp.ne.s32.totalorder %s161, %s164
      %p170 = scmp.eq.s32.totalorder %s15, 0
      %p171 = por %p169, %p170
      %p172 = scmp.ne.s32.totalorder %s161, %s164
      %p173 = scmp.eq.s32.totalorder %s20, 1
      %p174 = por %p172, %p173
      %p175 = scmp.ne.s32.totalorder %s164, %s165
      %p176 = scmp.eq.s32.totalorder %s20, 0
      %p177 = por %p175, %p176
      %p178 = scmp.ne.s32.totalorder %s164, %s165
      %p179 = scmp.eq.s32.totalorder %s21, 1
      %p180 = por %p178, %p179
      %p182 = scmp.ne.s32.totalorder %s165, %s181
      %p183 = scmp.eq.s32.totalorder %s21, 0
      %p184 = por %p182, %p183
      %p185 = scmp.le.s32.totalorder 1, %s15
      %p186 = scmp.lt.s32.totalorder %s15, 3
      %p187 = pnand %p185, %p186
      %p188 = pneg %p187
      // Predicated region
      $region9: #{tpu_custom_call.1} parent=5 // pred_check
        _
      $region10: #{tpu_custom_call.1} parent=5 // pred_check_branch
        %190 = sbr.rel (%p187) target = $region12
      $region11: #{tpu_custom_call.1} parent=5 // pred_region
        %s191 = ssub.s32 %s15, 1
        // Predicated region
        $region13: #{tpu_custom_call.1} parent=11 // pred_check
          %p192 = pneg %p62
        $region14: #{tpu_custom_call.1} parent=11 // pred_check_branch
          %194 = sbr.rel (%p192) target = $region16
        $region15: #{tpu_custom_call.1} parent=11 // pred_region
          _
        $region16: #{tpu_custom_call.1} parent=11 // pred_fallthru
          _
        // Predicated region
        $region17: #{tpu_custom_call.1} parent=11 // pred_check
          %p195 = pneg %p109
        $region18: #{tpu_custom_call.1} parent=11 // pred_check_branch
          %197 = sbr.rel (%p195) target = $region20
        $region19: #{tpu_custom_call.1} parent=11 // pred_region
          _
        $region20: #{tpu_custom_call.1} parent=11 // pred_fallthru
          _
        // Predicated region
        $region21: #{tpu_custom_call.1} parent=11 // pred_check
          %p198 = pneg %p130
        $region22: #{tpu_custom_call.1} parent=11 // pred_check_branch
          %200 = sbr.rel (%p198) target = $region24
        $region23: #{tpu_custom_call.1} parent=11 // pred_region
          _
        $region24: #{tpu_custom_call.1} parent=11 // pred_fallthru
          _
        // Predicated region
        $region25: #{tpu_custom_call.1} parent=11 // pred_check
          %p201 = pneg %p151
        $region26: #{tpu_custom_call.1} parent=11 // pred_check_branch
          %203 = sbr.rel (%p201) target = $region28
        $region27: #{tpu_custom_call.1} parent=11 // pred_region
          _
        $region28: #{tpu_custom_call.1} parent=11 // pred_fallthru
          _
      $region12: #{tpu_custom_call.1} parent=5 // pred_fallthru
        _
      %p204 = scmp.lt.s32.totalorder %s15, 2
      // Predicated region
      $region29: #{tpu_custom_call.1} parent=5 // pred_check
        %p205 = pneg %p204
      $region30: #{tpu_custom_call.1} parent=5 // pred_check_branch
        %207 = sbr.rel (%p205) target = $region32
      $region31: #{tpu_custom_call.1} parent=5 // pred_region
        // Predicated region
        $region33: #{tpu_custom_call.1} parent=31 // pred_check
          %p208 = pneg %p35
        $region34: #{tpu_custom_call.1} parent=31 // pred_check_branch
          %210 = sbr.rel (%p208) target = $region36
        $region35: #{tpu_custom_call.1} parent=31 // pred_region
          %s211 = smul.u32 4, %s15
          %p212 = scmp.lt.s32.totalorder %s211, 7
          %s213 = scalar_select %p212, %s211, 7
          %s214 = smul.addr %s213, 8
          %s215 = scalar_lea.vmem %s0, %s214
          %s216 = smul.u32 4, %s15
        $region36: #{tpu_custom_call.1} parent=31 // pred_fallthru
          _
        // Predicated region
        $region37: #{tpu_custom_call.1} parent=31 // pred_check
          %p217 = pneg %p82
        $region38: #{tpu_custom_call.1} parent=31 // pred_check_branch
          %219 = sbr.rel (%p217) target = $region40
        $region39: #{tpu_custom_call.1} parent=31 // pred_region
          %s220 = smul.u32 4, %s15
          %p221 = scmp.lt.s32.totalorder %s220, 7
          %s222 = scalar_select %p221, %s220, 7
          %s223 = smul.addr %s222, 8
          %s224 = scalar_lea.vmem %s2, %s223
          %s225 = smul.u32 4, %s15
        $region40: #{tpu_custom_call.1} parent=31 // pred_fallthru
          _
      $region32: #{tpu_custom_call.1} parent=5 // pred_fallthru
        _
      %p226 = scmp.le.s32.totalorder 1, %s15
      %p227 = scmp.lt.s32.totalorder %s15, 3
      %p228 = pnand %p226, %p227
      %p229 = pneg %p228
      // Predicated region
      $region41: #{tpu_custom_call.1} parent=5 // pred_check
        _
      $region42: #{tpu_custom_call.1} parent=5 // pred_check_branch
        %231 = sbr.rel (%p228) target = $region44
      $region43: #{tpu_custom_call.1} parent=5 // pred_region
        %s232 = ssub.s32 %s15, 1
        %s233 = smul.u32 4, %s20
        %p234 = scmp.lt.s32.totalorder %s233, 7
        %s235 = scalar_select %p234, %s233, 7
        %s236 = smul.addr %s235, 8
        %s237 = scalar_lea.vmem %s0, %s236
        %p238 = pneg %p41
        %p239 = pneg %p38
        %p240 = pneg %p62
        %p241 = pneg %p59
        %s242 = smul.u32 4, %s20
        %p243 = scmp.lt.s32.totalorder %s242, 7
        %s244 = scalar_select %p243, %s242, 7
        %s245 = smul.addr %s244, 8
        %s246 = scalar_lea.vmem %s2, %s245
        %p247 = pneg %p88
        %p248 = pneg %p85
        %p249 = pneg %p109
        %p250 = pneg %p106
        %p251 = pneg %p130
        %p252 = pneg %p127
        %p253 = pneg %p151
        %p254 = pneg %p148
        %p255 = pneg %p177
        %p256 = pneg %p174
        %s257 = sand.u32 %s164, 1
        %s258 = scalar_lea.sflag [#allocation3], %s257
        %s259 = sand.u32 %s164, 1
        %s260 = smul.addr %s259, 32
        %s261 = scalar_lea.vmem [#allocation2], %s260
        %s262 = smul.u32 4, %s20
        %p263 = scmp.lt.s32.totalorder %s262, 7
        %s264 = scalar_select %p263, %s262, 7
        %s265 = smul.addr %s264, 8
        %s266 = scalar_lea.vmem %s0, %s265
        %s267 = smul.u32 4, %s20
        %s268 = smul.u32 4, %s20
        %p269 = scmp.lt.s32.totalorder %s268, 7
        %s270 = scalar_select %p269, %s268, 7
        %s271 = smul.addr %s270, 8
        %s272 = scalar_lea.vmem %s2, %s271
        %s273 = smul.u32 4, %s20
        %s274 = smul.u32 4, %s20
        %v275 = vld [vmem:[%s266] sm:$0xff]
        %v276 = vld [vmem:[%s266 + $0x8] sm:$0xff]
        %v277 = vld [vmem:[%s266 + $0x10] sm:$0xff]
        %v278 = vld [vmem:[%s266 + $0x18] sm:$0xff]
        %v279 = vld [vmem:[%s1] sm:$0xff]
        %v280 = vld [vmem:[%s1 + $0x8] sm:$0xff]
        %v281 = vld [vmem:[%s1 + $0x10] sm:$0xff]
        %v282 = vld [vmem:[%s1 + $0x18] sm:$0xff]
        %v283 = vld [vmem:[%s1 + $0x20] sm:$0xff]
        %v284 = vld [vmem:[%s1 + $0x28] sm:$0xff]
        %v285 = vld [vmem:[%s1 + $0x30] sm:$0xff]
        %v286 = vld [vmem:[%s1 + $0x38] sm:$0xff]
        %v287 = vld [vmem:[%s272] sm:$0xff]
        %v288 = vld [vmem:[%s272 + $0x8] sm:$0xff]
        %v289 = vld [vmem:[%s272 + $0x10] sm:$0xff]
        %v290 = vld [vmem:[%s272 + $0x18] sm:$0xff]
        %vm291 = vcmask 523264
        %v293 = vsel %vm291, %v275, 0
        %v296 = vsel %vm291, %v276, 0
        %v299 = vsel %vm291, %v277, 0
        %v302 = vsel %vm291, %v278, 0
        %304 = vmatprep.subr.mxu0 0.0
        %305 = vmatpush1.msra.mxu0 0.0
        %306 = vmatprep.subr.mxu0 0.0
        %307 = vmatpush1.msra.mxu0 0.0
        %308 = vmatprep.subr.mxu0 0.0
        %309 = vmatpush1.msra.mxu0 0.0
        %310 = vmatprep.subr.mxu0 0.0
        %311 = vmatpush1.msra.mxu0 0.0
        %312 = vmatprep.subr.mxu0 0.0
        %313 = vmatpush1.msra.mxu0 0.0
        %314 = vmatprep.subr.mxu0 0.0
        %315 = vmatpush1.msra.mxu0 0.0
        %316 = vmatprep.subr.mxu0 0.0
        %317 = vmatpush1.msra.mxu0 0.0
        %318 = vmatprep.subr.mxu0 0.0
        %319 = vmatpush1.msra.mxu0 0.0
        %320 = vmatprep.subr.mxu0 0.0
        %321 = vmatpush1.msra.mxu0 %v286
        %322 = vmatprep.subr.mxu0 0.0
        %323 = vmatpush1.msra.mxu0 %v285
        %324 = vmatprep.subr.mxu0 0.0
        %325 = vmatpush1.msra.mxu0 %v284
        %326 = vmatprep.subr.mxu0 0.0
        %327 = vmatpush1.msra.mxu0 %v283
        %328 = vmatprep.subr.mxu0 0.0
        %329 = vmatpush1.msra.mxu0 %v282
        %330 = vmatprep.subr.mxu0 0.0
        %331 = vmatpush1.msra.mxu0 %v281
        %332 = vmatprep.subr.mxu0 0.0
        %333 = vmatpush1.msra.mxu0 %v280
        %334 = vmatprep.subr.mxu0 0.0
        %335 = vmatpush1.msra.mxu0 %v279
        %336 = vmatprep.subr.mxu0 0.0
        %337 = vmatpush2.msra.mxu0 0.0
        %338 = vmatprep.subr.mxu0 0.0
        %339 = vmatpush2.msra.mxu0 0.0
        %340 = vmatprep.subr.mxu0 0.0
        %341 = vmatpush2.msra.mxu0 0.0
        %342 = vmatprep.subr.mxu0 0.0
        %343 = vmatpush2.msra.mxu0 0.0
        %344 = vmatprep.subr.mxu0 0.0
        %345 = vmatpush2.msra.mxu0 0.0
        %346 = vmatprep.subr.mxu0 0.0
        %347 = vmatpush2.msra.mxu0 0.0
        %348 = vmatprep.subr.mxu0 0.0
        %349 = vmatpush2.msra.mxu0 0.0
        %350 = vmatprep.subr.mxu0 0.0
        %351 = vmatpush2.msra.mxu0 0.0
        %352 = vmatprep.subr.mxu0 0.0
        %353 = vmatpush2.msra.mxu0 0.0
        %354 = vmatprep.subr.mxu0 0.0
        %355 = vmatpush2.msra.mxu0 0.0
        %356 = vmatprep.subr.mxu0 0.0
        %357 = vmatpush2.msra.mxu0 0.0
        %358 = vmatprep.subr.mxu0 0.0
        %359 = vmatpush2.msra.mxu0 0.0
        %360 = vmatprep.subr.mxu0 0.0
        %361 = vmatpush2.msra.mxu0 0.0
        %362 = vmatprep.subr.mxu0 0.0
        %363 = vmatpush2.msra.mxu0 0.0
        %364 = vmatprep.subr.mxu0 0.0
        %365 = vmatpush2.msra.mxu0 0.0
        %366 = vmatprep.subr.mxu0 0.0
        %367 = vmatpush2.msra.mxu0 0.0
        %368 = vmatprep.mubr.f32.mxu0 0.0
        %369 = vmatmul.mubr.f32.gmra.mxu0 %v293
        %v370 = vpop.f32.mrf.mxu0
        %v371 = vadd.f32 0.0, %v370
        %v372 = vpop.f32.mrf.mxu0
        %373 = vmatprep.mubr.f32.mxu0 0.0
        %374 = vmatmul.mubr.f32.gmra.mxu0 %v296
        %v375 = vpop.f32.mrf.mxu0
        %v376 = vadd.f32 0.0, %v375
        %v377 = vpop.f32.mrf.mxu0
        %378 = vmatprep.mubr.f32.mxu0 0.0
        %379 = vmatmul.mubr.f32.gmra.mxu0 %v299
        %v380 = vpop.f32.mrf.mxu0
        %v381 = vadd.f32 0.0, %v380
        %v382 = vpop.f32.mrf.mxu0
        %383 = vmatprep.mubr.f32.mxu0 0.0
        %384 = vmatmul.mubr.f32.gmra.mxu0 %v302
        %v385 = vpop.f32.mrf.mxu0
        %v386 = vadd.f32 0.0, %v385
        %v387 = vpop.f32.mrf.mxu0
        %388 = vdwg.mxu0
        %v389 = vld [vmem:[%s3] sm:$0xff]
        %v390 = vld [vmem:[%s3 + $0x8] sm:$0xff]
        %v391 = vld [vmem:[%s4] sm:$0xff]
        %v392 = vld [vmem:[%s4 + $0x8] sm:$0xff]
        %vm393 = vcmask 130048
        %v395 = vsel %vm393, %v287, 0
        %v398 = vsel %vm393, %v288, 0
        %v401 = vsel %vm393, %v289, 0
        %v404 = vsel %vm393, %v290, 0
        %406 = vmatprep.subr.mxu0 0.0
        %407 = vmatpush1.msra.mxu0 0.0
        %408 = vmatprep.subr.mxu0 0.0
        %409 = vmatpush1.msra.mxu0 0.0
        %410 = vmatprep.subr.mxu0 0.0
        %411 = vmatpush1.msra.mxu0 0.0
        %412 = vmatprep.subr.mxu0 0.0
        %413 = vmatpush1.msra.mxu0 0.0
        %414 = vmatprep.subr.mxu0 0.0
        %415 = vmatpush1.msra.mxu0 0.0
        %416 = vmatprep.subr.mxu0 0.0
        %417 = vmatpush1.msra.mxu0 0.0
        %418 = vmatprep.subr.mxu0 0.0
        %419 = vmatpush1.msra.mxu0 0.0
        %420 = vmatprep.subr.mxu0 0.0
        %421 = vmatpush1.msra.mxu0 0.0
        %422 = vmatprep.subr.mxu0 0.0
        %423 = vmatpush1.msra.mxu0 0.0
        %424 = vmatprep.subr.mxu0 0.0
        %425 = vmatpush1.msra.mxu0 0.0
        %426 = vmatprep.subr.mxu0 0.0
        %427 = vmatpush1.msra.mxu0 0.0
        %428 = vmatprep.subr.mxu0 0.0
        %429 = vmatpush1.msra.mxu0 0.0
        %430 = vmatprep.subr.mxu0 0.0
        %431 = vmatpush1.msra.mxu0 0.0
        %432 = vmatprep.subr.mxu0 0.0
        %433 = vmatpush1.msra.mxu0 0.0
        %434 = vmatprep.subr.mxu0 0.0
        %435 = vmatpush1.msra.mxu0 %v392
        %436 = vmatprep.subr.mxu0 0.0
        %437 = vmatpush1.msra.mxu0 %v391
        %438 = vmatprep.subr.mxu0 0.0
        %439 = vmatpush2.msra.mxu0 0.0
        %440 = vmatprep.subr.mxu0 0.0
        %441 = vmatpush2.msra.mxu0 0.0
        %442 = vmatprep.subr.mxu0 0.0
        %443 = vmatpush2.msra.mxu0 0.0
        %444 = vmatprep.subr.mxu0 0.0
        %445 = vmatpush2.msra.mxu0 0.0
        %446 = vmatprep.subr.mxu0 0.0
        %447 = vmatpush2.msra.mxu0 0.0
        %448 = vmatprep.subr.mxu0 0.0
        %449 = vmatpush2.msra.mxu0 0.0
        %450 = vmatprep.subr.mxu0 0.0
        %451 = vmatpush2.msra.mxu0 0.0
        %452 = vmatprep.subr.mxu0 0.0
        %453 = vmatpush2.msra.mxu0 0.0
        %454 = vmatprep.subr.mxu0 0.0
        %455 = vmatpush2.msra.mxu0 0.0
        %456 = vmatprep.subr.mxu0 0.0
        %457 = vmatpush2.msra.mxu0 0.0
        %458 = vmatprep.subr.mxu0 0.0
        %459 = vmatpush2.msra.mxu0 0.0
        %460 = vmatprep.subr.mxu0 0.0
        %461 = vmatpush2.msra.mxu0 0.0
        %462 = vmatprep.subr.mxu0 0.0
        %463 = vmatpush2.msra.mxu0 0.0
        %464 = vmatprep.subr.mxu0 0.0
        %465 = vmatpush2.msra.mxu0 0.0
        %466 = vmatprep.subr.mxu0 0.0
        %467 = vmatpush2.msra.mxu0 0.0
        %468 = vmatprep.subr.mxu0 0.0
        %469 = vmatpush2.msra.mxu0 0.0
        %470 = vmatprep.mubr.f32.mxu0 0.0
        %471 = vmatmul.mubr.f32.gmra.mxu0 %v395
        %v472 = vpop.f32.mrf.mxu0
        %v473 = vadd.f32 0.0, %v472
        %v474 = vpop.f32.mrf.mxu0
        %475 = vmatprep.mubr.f32.mxu0 0.0
        %476 = vmatmul.mubr.f32.gmra.mxu0 %v398
        %v477 = vpop.f32.mrf.mxu0
        %v478 = vadd.f32 0.0, %v477
        %v479 = vpop.f32.mrf.mxu0
        %480 = vmatprep.mubr.f32.mxu0 0.0
        %481 = vmatmul.mubr.f32.gmra.mxu0 %v401
        %v482 = vpop.f32.mrf.mxu0
        %v483 = vadd.f32 0.0, %v482
        %v484 = vpop.f32.mrf.mxu0
        %485 = vmatprep.mubr.f32.mxu0 0.0
        %486 = vmatmul.mubr.f32.gmra.mxu0 %v404
        %v487 = vpop.f32.mrf.mxu0
        %v488 = vadd.f32 0.0, %v487
        %v489 = vpop.f32.mrf.mxu0
        %490 = vdwg.mxu0
        %v492 = vsel %vm393, %v371, 0
        %v495 = vsel %vm393, %v376, 0
        %v498 = vsel %vm393, %v381, 0
        %v501 = vsel %vm393, %v386, 0
        %503 = vmatprep.subr.mxu0 0.0
        %504 = vmatpush1.msra.mxu0 0.0
        %505 = vmatprep.subr.mxu0 0.0
        %506 = vmatpush1.msra.mxu0 0.0
        %507 = vmatprep.subr.mxu0 0.0
        %508 = vmatpush1.msra.mxu0 0.0
        %509 = vmatprep.subr.mxu0 0.0
        %510 = vmatpush1.msra.mxu0 0.0
        %511 = vmatprep.subr.mxu0 0.0
        %512 = vmatpush1.msra.mxu0 0.0
        %513 = vmatprep.subr.mxu0 0.0
        %514 = vmatpush1.msra.mxu0 0.0
        %515 = vmatprep.subr.mxu0 0.0
        %516 = vmatpush1.msra.mxu0 0.0
        %517 = vmatprep.subr.mxu0 0.0
        %518 = vmatpush1.msra.mxu0 0.0
        %519 = vmatprep.subr.mxu0 0.0
        %520 = vmatpush1.msra.mxu0 0.0
        %521 = vmatprep.subr.mxu0 0.0
        %522 = vmatpush1.msra.mxu0 0.0
        %523 = vmatprep.subr.mxu0 0.0
        %524 = vmatpush1.msra.mxu0 0.0
        %525 = vmatprep.subr.mxu0 0.0
        %526 = vmatpush1.msra.mxu0 0.0
        %527 = vmatprep.subr.mxu0 0.0
        %528 = vmatpush1.msra.mxu0 0.0
        %529 = vmatprep.subr.mxu0 0.0
        %530 = vmatpush1.msra.mxu0 0.0
        %531 = vmatprep.subr.mxu0 0.0
        %532 = vmatpush1.msra.mxu0 %v390
        %533 = vmatprep.subr.mxu0 0.0
        %534 = vmatpush1.msra.mxu0 %v389
        %535 = vmatprep.subr.mxu0 0.0
        %536 = vmatpush2.msra.mxu0 0.0
        %537 = vmatprep.subr.mxu0 0.0
        %538 = vmatpush2.msra.mxu0 0.0
        %539 = vmatprep.subr.mxu0 0.0
        %540 = vmatpush2.msra.mxu0 0.0
        %541 = vmatprep.subr.mxu0 0.0
        %542 = vmatpush2.msra.mxu0 0.0
        %543 = vmatprep.subr.mxu0 0.0
        %544 = vmatpush2.msra.mxu0 0.0
        %545 = vmatprep.subr.mxu0 0.0
        %546 = vmatpush2.msra.mxu0 0.0
        %547 = vmatprep.subr.mxu0 0.0
        %548 = vmatpush2.msra.mxu0 0.0
        %549 = vmatprep.subr.mxu0 0.0
        %550 = vmatpush2.msra.mxu0 0.0
        %551 = vmatprep.subr.mxu0 0.0
        %552 = vmatpush2.msra.mxu0 0.0
        %553 = vmatprep.subr.mxu0 0.0
        %554 = vmatpush2.msra.mxu0 0.0
        %555 = vmatprep.subr.mxu0 0.0
        %556 = vmatpush2.msra.mxu0 0.0
        %557 = vmatprep.subr.mxu0 0.0
        %558 = vmatpush2.msra.mxu0 0.0
        %559 = vmatprep.subr.mxu0 0.0
        %560 = vmatpush2.msra.mxu0 0.0
        %561 = vmatprep.subr.mxu0 0.0
        %562 = vmatpush2.msra.mxu0 0.0
        %563 = vmatprep.subr.mxu0 0.0
        %564 = vmatpush2.msra.mxu0 0.0
        %565 = vmatprep.subr.mxu0 0.0
        %566 = vmatpush2.msra.mxu0 0.0
        %567 = vmatprep.mubr.f32.mxu0 0.0
        %568 = vmatmul.mubr.f32.gmra.mxu0 %v492
        %v569 = vpop.f32.mrf.mxu0
        %v570 = vadd.f32 %v473, %v569
        %v571 = vpop.f32.mrf.mxu0
        %572 = vmatprep.mubr.f32.mxu0 0.0
        %573 = vmatmul.mubr.f32.gmra.mxu0 %v495
        %v574 = vpop.f32.mrf.mxu0
        %v575 = vadd.f32 %v478, %v574
        %v576 = vpop.f32.mrf.mxu0
        %577 = vmatprep.mubr.f32.mxu0 0.0
        %578 = vmatmul.mubr.f32.gmra.mxu0 %v498
        %v579 = vpop.f32.mrf.mxu0
        %v580 = vadd.f32 %v483, %v579
        %v581 = vpop.f32.mrf.mxu0
        %582 = vmatprep.mubr.f32.mxu0 0.0
        %583 = vmatmul.mubr.f32.gmra.mxu0 %v501
        %v584 = vpop.f32.mrf.mxu0
        %v585 = vadd.f32 %v488, %v584
        %v586 = vpop.f32.mrf.mxu0
        %587 = vdwg.mxu0
        %v588 = vld [vmem:[%s5] sm:$0x1]
        %v590 = vlaneseq
        %v591 = vshrl.u32 %v590, 7
        %v592 = vsub.s32 0, %v591
        %v593 = vrot.slane %v588, %v592
        %v595 = vadd.f32 %v570, %v593
        %v596 = vadd.f32 %v575, %v593
        %v597 = vadd.f32 %v580, %v593
        %v598 = vadd.f32 %v585, %v593
        %v599 = vmax.f32 %v595, 0.0
        %v600 = vmax.f32 %v596, 0.0
        %v601 = vmax.f32 %v597, 0.0
        %v602 = vmax.f32 %v598, 0.0
        %603 = vst [vmem:[%s261] sm:$0xff] %v599
        %604 = vst [vmem:[%s261 + $0x8] sm:$0xff] %v600
        %605 = vst [vmem:[%s261 + $0x10] sm:$0xff] %v601
        %606 = vst [vmem:[%s261 + $0x18] sm:$0xff] %v602
        %s607 = sand.u32 %s164, 1
        %s608 = scalar_lea.sflag [#allocation3], %s607
        %s609 = sand.u32 %s164, 1
        %s610 = smul.addr %s609, 32
        %s611 = scalar_lea.vmem [#allocation2], %s610
        // Predicated region
        $region45: #{tpu_custom_call.1} parent=43 // pred_check
          %p612 = pneg %p174
        $region46: #{tpu_custom_call.1} parent=43 // pred_check_branch
          %614 = sbr.rel (%p612) target = $region48
        $region47: #{tpu_custom_call.1} parent=43 // pred_region
          %s615 = smul.u32 4, %s20
          %s617 = ssub.s32 512, 512
          %618 = vsyncadd %s608, %s617
          %s619 = smul.addr %s615, 128
          %s620 = scalar_lea.hbm %s6, %s619
          %s621 = sshll.u32 %s611, 4
          %s622 = int_to_ptr.vmem [resolvable:$true] %s621
          %627 = dma.vmem_to_hbm [thread:$0]  %s622, 512, %s620, %s608, 128, 128, 8
        $region48: #{tpu_custom_call.1} parent=43 // pred_fallthru
          _
      $region44: #{tpu_custom_call.1} parent=5 // pred_fallthru
        _
      %p628 = scmp.le.s32.totalorder 2, %s15
      // Predicated region
      $region49: #{tpu_custom_call.1} parent=5 // pred_check
        %p629 = pneg %p628
      $region50: #{tpu_custom_call.1} parent=5 // pred_check_branch
        %631 = sbr.rel (%p629) target = $region52
      $region51: #{tpu_custom_call.1} parent=5 // pred_region
        %s632 = ssub.s32 %s15, 2
        // Predicated region
        $region53: #{tpu_custom_call.1} parent=51 // pred_check
          %p633 = pneg %p180
        $region54: #{tpu_custom_call.1} parent=51 // pred_check_branch
          %635 = sbr.rel (%p633) target = $region56
        $region55: #{tpu_custom_call.1} parent=51 // pred_region
          %s636 = sand.u32 %s165, 1
          %s637 = scalar_lea.sflag [#allocation3], %s636
          %s638 = sand.u32 %s165, 1
          %s639 = smul.addr %s638, 32
          %s640 = scalar_lea.vmem [#allocation2], %s639
          %641 = dma.done %s637, 512
        $region56: #{tpu_custom_call.1} parent=51 // pred_fallthru
          _
      $region52: #{tpu_custom_call.1} parent=5 // pred_fallthru
        _
    $region6: #{tpu_custom_call.1} parent=1 // loop_footer
      %s19 = sadd.s32 1, %s15
    $region7: #{tpu_custom_call.1} parent=1 // loop_footer_branch
      %14 = sbr.rel target = $region3
    $region8: #{tpu_custom_call.1} parent=1 // loop_exit
      _
    %642 = vsyncpa [#allocation3], 1
    %s643 = scalar_lea.sflag [#allocation3], 1
    %644 = vsyncpa %s643, 1

</llo_original>
